<compile_context>
chip_gen: v7x
topology: tpu7x:2x2x1
jax: 0.10.0
libtpu: 0.0.40
codegen_flags: <defaults>
</compile_context>

<pallas_src>
import jax
import jax.numpy as jnp
from jax.experimental import pallas as pl
from jax.experimental.pallas import tpu as pltpu

_MIN_SPLIT_BATCH = 1024     # force >=2 parallel tiles above this (v7x: 2 TensorCores)


def _round_up(n, m):
    return ((n + m - 1) // m) * m


def _qnet_kernel(xt_ref, w1t_ref, b1t_ref, w2t_ref, b2t_ref, ot_ref, xpad_ref):
    # xt_ref : (F, tb) f32      -- batch on lanes, features unpadded (F = 11)
    # w1t_ref: (Hp, Kp) f32     -- torch linear1.weight zero-padded (128, 16)
    # b1t_ref: (Hp, 1)  f32
    # w2t_ref: (Op, Hp) f32     -- torch linear2.weight zero-padded (8, 128)
    # b2t_ref: (Op, 1)  f32
    # ot_ref : (Op, tb) f32     -- lane-dense output slab
    # xpad_ref: (Kp, tb) f32 scratch -- K-padding done in VMEM, never in HBM
    f_in = xt_ref.shape[0]
    xpad_ref[...] = jnp.zeros_like(xpad_ref)
    xpad_ref[:f_in, :] = xt_ref[...]

    # Layer 1: h = relu(W1 @ x + b1)          (Hp, tb)
    h = jnp.dot(w1t_ref[...], xpad_ref[...], preferred_element_type=jnp.float32)
    h = jnp.maximum(h + b1t_ref[...], 0.0)

    # Layer 2: y = W2 @ h + b2                (Op, tb), lane-dense store
    y = jnp.dot(w2t_ref[...], h, preferred_element_type=jnp.float32)
    ot_ref[...] = y + b2t_ref[...]


def init_params(key, input_size, hidden_size, output_size):
    """torch.nn.Linear-style U(-1/sqrt(fan_in), 1/sqrt(fan_in)) init.

    Weights are kept in the torch (out, in) orientation (that is exactly what
    the transposed kernel wants), zero-padded: contraction dim to a sublane
    multiple (16), hidden to 128 lanes, output rows to 8 sublanes. f32."""
    in_p = _round_up(input_size, 8)       # K of layer-1 (sublane multiple), 11 -> 16
    hid_p = _round_up(hidden_size, 128)   # lane dim of hidden activations
    out_p = _round_up(output_size, 8)     # sublane rows of the output slab, 3 -> 8

    k1, k2, k3, k4 = jax.random.split(key, 4)
    bound1 = 1.0 / (input_size ** 0.5)
    bound2 = 1.0 / (hidden_size ** 0.5)
    w1 = jax.random.uniform(k1, (hidden_size, input_size), jnp.float32, -bound1, bound1)
    b1 = jax.random.uniform(k2, (hidden_size,), jnp.float32, -bound1, bound1)
    w2 = jax.random.uniform(k3, (output_size, hidden_size), jnp.float32, -bound2, bound2)
    b2 = jax.random.uniform(k4, (output_size,), jnp.float32, -bound2, bound2)

    w1t = jnp.zeros((hid_p, in_p), jnp.float32).at[:hidden_size, :input_size].set(w1)
    b1t = jnp.zeros((hid_p, 1), jnp.float32).at[:hidden_size, 0].set(b1)
    w2t = jnp.zeros((out_p, hid_p), jnp.float32).at[:output_size, :hidden_size].set(w2)
    b2t = jnp.zeros((out_p, 1), jnp.float32).at[:output_size, 0].set(b2)
    return w1t, b1t, w2t, b2t


def linear_qnet_forward(x, params, output_size, *, tile_b=2048):
    """Fused forward pass. x: (B, input_size) f32. Returns (B, output_size) f32."""
    w1t, b1t, w2t, b2t = params
    B, F = x.shape
    in_p = w1t.shape[1]
    out_p = w2t.shape[0]
    assert F <= in_p

    # Tile selection: split B nearly evenly into tiles of at most tile_b rows.
    tile_b = max(128, int(tile_b))
    n_tiles = max(1, -(-B // tile_b))
    if n_tiles == 1 and B >= _MIN_SPLIT_BATCH:
        n_tiles = 2                       # keep both v7x TensorCores busy
    if n_tiles == 1:
        tb = _round_up(B, 8)              # single full-array tile (no grid)
    else:
        tb = _round_up(-(-B // n_tiles), 128)   # lane dim of blocked arrays
    b_pad = tb * n_tiles

    # Only batch rows are padded (cheap: 44 B/row, and only when B % tb != 0);
    # the feature dim stays at 11 in HBM.  Transpose -> batch on lanes.
    if b_pad != B:
        x = jnp.pad(x, ((0, b_pad - B), (0, 0)))
    xt = x.T                              # (F, b_pad)

    if n_tiles == 1:
        # Gridless single tile: everything is a full-array VMEM block.
        out_t = pl.pallas_call(
            _qnet_kernel,
            out_shape=jax.ShapeDtypeStruct((out_p, b_pad), jnp.float32),
            in_specs=[pl.BlockSpec(memory_space=pltpu.MemorySpace.VMEM)] * 5,
            out_specs=pl.BlockSpec(memory_space=pltpu.MemorySpace.VMEM),
            scratch_shapes=[pltpu.VMEM((in_p, b_pad), jnp.float32)],
        )(xt, w1t, b1t, w2t, b2t)
    else:
        # Batch is a parallel grid axis; weights/biases stay resident in VMEM
        # (constant index_map -> no re-DMA per step).
        out_t = pl.pallas_call(
            _qnet_kernel,
            out_shape=jax.ShapeDtypeStruct((out_p, b_pad), jnp.float32),
            grid=(n_tiles,),
            in_specs=[
                pl.BlockSpec((F, tb), lambda i: (0, i)),
                pl.BlockSpec(w1t.shape, lambda i: (0, 0)),
                pl.BlockSpec(b1t.shape, lambda i: (0, 0)),
                pl.BlockSpec(w2t.shape, lambda i: (0, 0)),
                pl.BlockSpec(b2t.shape, lambda i: (0, 0)),
            ],
            out_specs=pl.BlockSpec((out_p, tb), lambda i: (0, i)),
            scratch_shapes=[pltpu.VMEM((in_p, tb), jnp.float32)],
            compiler_params=pltpu.CompilerParams(
                dimension_semantics=("parallel",),
                vmem_limit_bytes=32 * 1024 * 1024),
        )(xt, w1t, b1t, w2t, b2t)

    # Final slice/transpose only touches the small (8, b_pad) slab (~32 B/row).
    return out_t[:output_size, :B].T


if __name__ == "__main__":
    # Snake-agent-style sizes: input=11 state features, hidden=32, output=3 actions.
    input_size, hidden_size, output_size = 11, 32, 3

    key = jax.random.PRNGKey(0)
    kp, kx1, kx2 = jax.random.split(key, 3)
    params = init_params(kp, input_size, hidden_size, output_size)

    # Path 1: tiny batch -> gridless single-tile kernel.
    x_small = jax.random.normal(kx1, (4, input_size), jnp.float32)
    out_small = jax.block_until_ready(
        linear_qnet_forward(x_small, params, output_size))

    # Path 2: batched -> batch grid axis (tile_b=128 -> grid=(2,), "parallel").
    x_big = jax.random.normal(kx2, (256, input_size), jnp.float32)
    out_big = jax.block_until_ready(
        linear_qnet_forward(x_big, params, output_size, tile_b=128))

    # Pure-JAX f32 reference (same math as the PyTorch module).
    def ref(xb):
        w1t, b1t, w2t, b2t = params
        w1 = w1t[:hidden_size, :input_size]
        b1 = b1t[:hidden_size, 0]
        w2 = w2t[:output_size, :hidden_size]
        b2 = b2t[:output_size, 0]
        h = jnp.maximum(xb @ w1.T + b1, 0.0)
        return h @ w2.T + b2

    assert out_small.shape == (4, output_size)
    assert out_big.shape == (256, output_size)
    # Tolerance allows for the MXU evaluating f32 matmuls with bf16 passes.
    assert jnp.allclose(out_small, ref(x_small), atol=2e-2, rtol=2e-2)
    assert jnp.allclose(out_big, ref(x_big), atol=2e-2, rtol=2e-2)

    # TODO(synk): Linear_QNet.save() (torch.save checkpointing) has no kernel equivalent.
    print("KERNEL_OK")
</pallas_src>

<mosaic_0001>
module attributes {stable_mosaic.version = 11 : i64} {
  func.func @_qnet_kernel(%arg0: memref<11x8xf32, #tpu.memory_space<vmem>>, %arg1: memref<128x16xf32, #tpu.memory_space<vmem>>, %arg2: memref<128x1xf32, #tpu.memory_space<vmem>>, %arg3: memref<8x128xf32, #tpu.memory_space<vmem>>, %arg4: memref<8x1xf32, #tpu.memory_space<vmem>>, %arg5: memref<8x8xf32, #tpu.memory_space<vmem>>, %arg6: memref<16x8xf32, #tpu.memory_space<vmem>>) attributes {dimension_semantics = [], scalar_prefetch = 0 : i64, scratch_operands = 1 : i64, tpu.core_type = #tpu.core_type<tc>} {
    %cst = arith.constant 0.000000e+00 : f32
    %0 = vector.broadcast %cst : f32 to vector<16x8xf32>
    %c0 = arith.constant 0 : index
    %c0_0 = arith.constant 0 : index
    %1 = vector.load %arg6[%c0, %c0_0] : memref<16x8xf32, #tpu.memory_space<vmem>>, vector<16x8xf32>
    tpu.vector_store %arg6[%c0, %c0_0], %0 {strides = array<i32>} : memref<16x8xf32, #tpu.memory_space<vmem>>, vector<16x8xf32>,
    %c0_1 = arith.constant 0 : index
    %c0_2 = arith.constant 0 : index
    %2 = vector.load %arg0[%c0_1, %c0_2] : memref<11x8xf32, #tpu.memory_space<vmem>>, vector<11x8xf32>
    %c0_3 = arith.constant 0 : index
    %c0_4 = arith.constant 0 : index
    %3 = vector.load %arg6[%c0_3, %c0_4] : memref<16x8xf32, #tpu.memory_space<vmem>>, vector<11x8xf32>
    tpu.vector_store %arg6[%c0_3, %c0_4], %2 {strides = array<i32>} : memref<16x8xf32, #tpu.memory_space<vmem>>, vector<11x8xf32>,
    %c0_5 = arith.constant 0 : index
    %c0_6 = arith.constant 0 : index
    %4 = vector.load %arg1[%c0_5, %c0_6] : memref<128x16xf32, #tpu.memory_space<vmem>>, vector<128x16xf32>
    %c0_7 = arith.constant 0 : index
    %c0_8 = arith.constant 0 : index
    %5 = vector.load %arg6[%c0_7, %c0_8] : memref<16x8xf32, #tpu.memory_space<vmem>>, vector<16x8xf32>
    %cst_9 = arith.constant dense<0.000000e+00> : vector<128x8xf32>
    %6 = tpu.matmul %4, %5, %cst_9 {dimension_numbers = #tpu.dot_dimension_numbers<[1], [0], [0], [1], [0, 0, 1, 1], [], []>} : vector<128x16xf32>, vector<16x8xf32>, vector<128x8xf32> -> vector<128x8xf32>
    %c0_10 = arith.constant 0 : index
    %c0_11 = arith.constant 0 : index
    %7 = vector.load %arg2[%c0_10, %c0_11] : memref<128x1xf32, #tpu.memory_space<vmem>>, vector<128x1xf32>
    %8 = vector.broadcast %7 : vector<128x1xf32> to vector<128x8xf32>
    %9 = arith.addf %6, %8 : vector<128x8xf32>
    %cst_12 = arith.constant 0.000000e+00 : f32
    %10 = vector.broadcast %cst_12 : f32 to vector<128x8xf32>
    %11 = arith.maximumf %9, %10 : vector<128x8xf32>
    %c0_13 = arith.constant 0 : index
    %c0_14 = arith.constant 0 : index
    %12 = vector.load %arg3[%c0_13, %c0_14] : memref<8x128xf32, #tpu.memory_space<vmem>>, vector<8x128xf32>
    %cst_15 = arith.constant dense<0.000000e+00> : vector<8x8xf32>
    %13 = tpu.matmul %12, %11, %cst_15 {dimension_numbers = #tpu.dot_dimension_numbers<[1], [0], [0], [1], [0, 0, 1, 1], [], []>} : vector<8x128xf32>, vector<128x8xf32>, vector<8x8xf32> -> vector<8x8xf32>
    %c0_16 = arith.constant 0 : index
    %c0_17 = arith.constant 0 : index
    %14 = vector.load %arg4[%c0_16, %c0_17] : memref<8x1xf32, #tpu.memory_space<vmem>>, vector<8x1xf32>
    %15 = vector.broadcast %14 : vector<8x1xf32> to vector<8x8xf32>
    %16 = arith.addf %13, %15 : vector<8x8xf32>
    %c0_18 = arith.constant 0 : index
    %c0_19 = arith.constant 0 : index
    %17 = vector.load %arg5[%c0_18, %c0_19] : memref<8x8xf32, #tpu.memory_space<vmem>>, vector<8x8xf32>
    tpu.vector_store %arg5[%c0_18, %c0_19], %16 {strides = array<i32>} : memref<8x8xf32, #tpu.memory_space<vmem>>, vector<8x8xf32>,
    return
  }
}

</mosaic_0001>

<llo_original>
// kernel: tpu_custom_call.1
$region0: #{tpu_custom_call.1}
  #allocation0 [shape = 'u32[]', space=smem, size = 0x4, offset = 0x4, fixed_abs, tag = 'smem constant byte address 0x4 - core index']
  #allocation1 [shape = 'u32[144,128]{1,0:T(1,128)}', space=vmem, size = 0x12000, scoped, tag = 'internal scratch']
  #allocation2 [shape = 'f32[16,8]{1,0:T(8,128)}', space=vmem, size = 0x2000, scoped, tag = 'scratch operand']
  %s0 = inlined_call_operand.vmem [shape: f32[11,8], index: 0, kind: input, shape index: {}]
  %s1 = inlined_call_operand.vmem [shape: f32[128,16], index: 1, kind: input, shape index: {}]
  %s2 = inlined_call_operand.vmem [shape: f32[128,1], index: 2, kind: input, shape index: {}]
  %s3 = inlined_call_operand.vmem [shape: f32[8,128], index: 3, kind: input, shape index: {}]
  %s4 = inlined_call_operand.vmem [shape: f32[8,1], index: 4, kind: input, shape index: {}]
  %s5 = inlined_call_operand.hbm [shape: f32[8,8], index: 5, kind: output, shape index: {}]
  %s6 = sld [smem:[#allocation0]]
  $region30: #{tpu_custom_call.1} parent=0
    _
  %s8 = ssub.s32 1, %s6
  %s9 = scalar_select 0, %s8, %s6
  $region1: #{tpu_custom_call.1} parent=0
    #allocation3 [shape = 'u8[4096]{0}', space=vmem, size = 0x1000, scoped, tag = 'output window, operand 0, single buffered']
    #allocation4 [shape = 's32[1]{0}', space=sflag, size = 0x4, scoped, tag = 'scoped memory for tpu_custom_call.1']
    %10 = vsyncpa [#allocation4], 0
    // Predicated region
    $region2: #{tpu_custom_call.1} parent=1 // pred_check
      _
    $region3: #{tpu_custom_call.1} parent=1 // pred_check_branch
      %12 = sbr.rel (0) target = $region5
    $region4: #{tpu_custom_call.1} parent=1 // pred_region
      _
    $region5: #{tpu_custom_call.1} parent=1 // pred_fallthru
      _
    // Predicated region
    $region6: #{tpu_custom_call.1} parent=1 // pred_check
      _
    $region7: #{tpu_custom_call.1} parent=1 // pred_check_branch
      %14 = sbr.rel (0) target = $region9
    $region8: #{tpu_custom_call.1} parent=1 // pred_region
      _
    $region9: #{tpu_custom_call.1} parent=1 // pred_fallthru
      _
    // Predicated region
    $region10: #{tpu_custom_call.1} parent=1 // pred_check
      _
    $region11: #{tpu_custom_call.1} parent=1 // pred_check_branch
      %16 = sbr.rel (0) target = $region13
    $region12: #{tpu_custom_call.1} parent=1 // pred_region
      _
    $region13: #{tpu_custom_call.1} parent=1 // pred_fallthru
      _
    // Predicated region
    $region14: #{tpu_custom_call.1} parent=1 // pred_check
      _
    $region15: #{tpu_custom_call.1} parent=1 // pred_check_branch
      %18 = sbr.rel (0) target = $region17
    $region16: #{tpu_custom_call.1} parent=1 // pred_region
      _
    $region17: #{tpu_custom_call.1} parent=1 // pred_fallthru
      _
    // Predicated region
    $region18: #{tpu_custom_call.1} parent=1 // pred_check
      _
    $region19: #{tpu_custom_call.1} parent=1 // pred_check_branch
      %20 = sbr.rel (0) target = $region21
    $region20: #{tpu_custom_call.1} parent=1 // pred_region
      _
    $region21: #{tpu_custom_call.1} parent=1 // pred_fallthru
      _
    %vm21 = vcmask 64512
    %22 = vst.msk [vmem:[#allocation2] sm:$0xff] %vm21, 0.0
    %23 = vst.msk [vmem:[#allocation2 + $0x8] sm:$0xff] %vm21, 0.0
    %v24 = vld [vmem:[%s0] sm:$0xff]
    %v25 = vld [vmem:[%s0 + $0x8] sm:$0x7]
    %26 = vst.msk [vmem:[#allocation2] sm:$0xff] %vm21, %v24
    %vm27 = vcmask 59392
    %28 = vst.msk [vmem:[#allocation2 + $0x8] sm:$0x7] %vm27, %v25
    %v29 = vld [vmem:[%s1] sm:$0xff]
    %v30 = vld [vmem:[%s1 + $0x8] sm:$0xff]
    %v31 = vld [vmem:[%s1 + $0x10] sm:$0xff]
    %v32 = vld [vmem:[%s1 + $0x18] sm:$0xff]
    %v33 = vld [vmem:[%s1 + $0x20] sm:$0xff]
    %v34 = vld [vmem:[%s1 + $0x28] sm:$0xff]
    %v35 = vld [vmem:[%s1 + $0x30] sm:$0xff]
    %v36 = vld [vmem:[%s1 + $0x38] sm:$0xff]
    %v37 = vld [vmem:[%s1 + $0x40] sm:$0xff]
    %v38 = vld [vmem:[%s1 + $0x48] sm:$0xff]
    %v39 = vld [vmem:[%s1 + $0x50] sm:$0xff]
    %v40 = vld [vmem:[%s1 + $0x58] sm:$0xff]
    %v41 = vld [vmem:[%s1 + $0x60] sm:$0xff]
    %v42 = vld [vmem:[%s1 + $0x68] sm:$0xff]
    %v43 = vld [vmem:[%s1 + $0x70] sm:$0xff]
    %v44 = vld [vmem:[%s1 + $0x78] sm:$0xff]
    %v45 = vld [vmem:[#allocation2] sm:$0xff]
    %v46 = vld [vmem:[#allocation2 + $0x8] sm:$0xff]
    %v47 = vld [vmem:[%s2] sm:$0xff]
    %v48 = vld [vmem:[%s2 + $0x8] sm:$0xff]
    %v49 = vld [vmem:[%s2 + $0x10] sm:$0xff]
    %v50 = vld [vmem:[%s2 + $0x18] sm:$0xff]
    %v51 = vld [vmem:[%s2 + $0x20] sm:$0xff]
    %v52 = vld [vmem:[%s2 + $0x28] sm:$0xff]
    %v53 = vld [vmem:[%s2 + $0x30] sm:$0xff]
    %v54 = vld [vmem:[%s2 + $0x38] sm:$0xff]
    %v55 = vld [vmem:[%s2 + $0x40] sm:$0xff]
    %v56 = vld [vmem:[%s2 + $0x48] sm:$0xff]
    %v57 = vld [vmem:[%s2 + $0x50] sm:$0xff]
    %v58 = vld [vmem:[%s2 + $0x58] sm:$0xff]
    %v59 = vld [vmem:[%s2 + $0x60] sm:$0xff]
    %v60 = vld [vmem:[%s2 + $0x68] sm:$0xff]
    %v61 = vld [vmem:[%s2 + $0x70] sm:$0xff]
    %v62 = vld [vmem:[%s2 + $0x78] sm:$0xff]
    %64 = vset.pattern.permute.xlu0 0
    %65 = vperm.xlu0 %64, %v47
    %v66 = vpop.permute.xlu0 %65
    %69 = vset.pattern.permute.xlu0 0
    %70 = vperm.xlu0 %69, %v48
    %v71 = vpop.permute.xlu0 %70
    %74 = vset.pattern.permute.xlu0 0
    %75 = vperm.xlu0 %74, %v49
    %v76 = vpop.permute.xlu0 %75
    %79 = vset.pattern.permute.xlu0 0
    %80 = vperm.xlu0 %79, %v50
    %v81 = vpop.permute.xlu0 %80
    %84 = vset.pattern.permute.xlu0 0
    %85 = vperm.xlu0 %84, %v51
    %v86 = vpop.permute.xlu0 %85
    %89 = vset.pattern.permute.xlu0 0
    %90 = vperm.xlu0 %89, %v52
    %v91 = vpop.permute.xlu0 %90
    %94 = vset.pattern.permute.xlu0 0
    %95 = vperm.xlu0 %94, %v53
    %v96 = vpop.permute.xlu0 %95
    %99 = vset.pattern.permute.xlu0 0
    %100 = vperm.xlu0 %99, %v54
    %v101 = vpop.permute.xlu0 %100
    %104 = vset.pattern.permute.xlu0 0
    %105 = vperm.xlu0 %104, %v55
    %v106 = vpop.permute.xlu0 %105
    %109 = vset.pattern.permute.xlu0 0
    %110 = vperm.xlu0 %109, %v56
    %v111 = vpop.permute.xlu0 %110
    %114 = vset.pattern.permute.xlu0 0
    %115 = vperm.xlu0 %114, %v57
    %v116 = vpop.permute.xlu0 %115
    %119 = vset.pattern.permute.xlu0 0
    %120 = vperm.xlu0 %119, %v58
    %v121 = vpop.permute.xlu0 %120
    %124 = vset.pattern.permute.xlu0 0
    %125 = vperm.xlu0 %124, %v59
    %v126 = vpop.permute.xlu0 %125
    %129 = vset.pattern.permute.xlu0 0
    %130 = vperm.xlu0 %129, %v60
    %v131 = vpop.permute.xlu0 %130
    %134 = vset.pattern.permute.xlu0 0
    %135 = vperm.xlu0 %134, %v61
    %v136 = vpop.permute.xlu0 %135
    %139 = vset.pattern.permute.xlu0 0
    %140 = vperm.xlu0 %139, %v62
    %v141 = vpop.permute.xlu0 %140
    %vm143 = vcmask 130048
    %v145 = vsel %vm143, %v29, 0
    %v148 = vsel %vm143, %v30, 0
    %v151 = vsel %vm143, %v31, 0
    %v154 = vsel %vm143, %v32, 0
    %v157 = vsel %vm143, %v33, 0
    %v160 = vsel %vm143, %v34, 0
    %v163 = vsel %vm143, %v35, 0
    %v166 = vsel %vm143, %v36, 0
    %v169 = vsel %vm143, %v37, 0
    %v172 = vsel %vm143, %v38, 0
    %v175 = vsel %vm143, %v39, 0
    %v178 = vsel %vm143, %v40, 0
    %v181 = vsel %vm143, %v41, 0
    %v184 = vsel %vm143, %v42, 0
    %v187 = vsel %vm143, %v43, 0
    %v190 = vsel %vm143, %v44, 0
    %192 = vmatprep.subr.mxu0 0.0
    %193 = vmatpush1.msra.mxu0 %v45
    %194 = vmatprep.subr.mxu0 0.0
    %195 = vmatpush1.msra.mxu0 %v46
    %196 = vmatprep.subr.mxu0 0.0
    %197 = vmatpush1.msra.mxu0 0.0
    %198 = vmatprep.subr.mxu0 0.0
    %199 = vmatpush1.msra.mxu0 0.0
    %200 = vmatprep.subr.mxu0 0.0
    %201 = vmatpush1.msra.mxu0 0.0
    %202 = vmatprep.subr.mxu0 0.0
    %203 = vmatpush1.msra.mxu0 0.0
    %204 = vmatprep.subr.mxu0 0.0
    %205 = vmatpush1.msra.mxu0 0.0
    %206 = vmatprep.subr.mxu0 0.0
    %207 = vmatpush1.msra.mxu0 0.0
    %208 = vmatprep.subr.mxu0 0.0
    %209 = vmatpush1.msra.mxu0 0.0
    %210 = vmatprep.subr.mxu0 0.0
    %211 = vmatpush1.msra.mxu0 0.0
    %212 = vmatprep.subr.mxu0 0.0
    %213 = vmatpush1.msra.mxu0 0.0
    %214 = vmatprep.subr.mxu0 0.0
    %215 = vmatpush1.msra.mxu0 0.0
    %216 = vmatprep.subr.mxu0 0.0
    %217 = vmatpush1.msra.mxu0 0.0
    %218 = vmatprep.subr.mxu0 0.0
    %219 = vmatpush1.msra.mxu0 0.0
    %220 = vmatprep.subr.mxu0 0.0
    %221 = vmatpush1.msra.mxu0 0.0
    %222 = vmatprep.subr.mxu0 0.0
    %223 = vmatpush1.msra.mxu0 0.0
    %224 = vmatprep.subr.mxu0 0.0
    %225 = vmatpush1.msra.mxu0 0.0
    %226 = vmatprep.subr.mxu0 0.0
    %227 = vmatpush1.msra.mxu0 0.0
    %228 = vmatprep.subr.mxu0 0.0
    %229 = vmatpush1.msra.mxu0 0.0
    %230 = vmatprep.subr.mxu0 0.0
    %231 = vmatpush1.msra.mxu0 0.0
    %232 = vmatprep.subr.mxu0 0.0
    %233 = vmatpush1.msra.mxu0 0.0
    %234 = vmatprep.subr.mxu0 0.0
    %235 = vmatpush1.msra.mxu0 0.0
    %236 = vmatprep.subr.mxu0 0.0
    %237 = vmatpush1.msra.mxu0 0.0
    %238 = vmatprep.subr.mxu0 0.0
    %239 = vmatpush1.msra.mxu0 0.0
    %240 = vmatprep.subr.mxu0 0.0
    %241 = vmatpush1.msra.mxu0 0.0
    %242 = vmatprep.subr.mxu0 0.0
    %243 = vmatpush1.msra.mxu0 0.0
    %244 = vmatprep.subr.mxu0 0.0
    %245 = vmatpush1.msra.mxu0 0.0
    %246 = vmatprep.subr.mxu0 0.0
    %247 = vmatpush1.msra.mxu0 0.0
    %248 = vmatprep.subr.mxu0 0.0
    %249 = vmatpush1.msra.mxu0 0.0
    %250 = vmatprep.subr.mxu0 0.0
    %251 = vmatpush1.msra.mxu0 0.0
    %252 = vmatprep.subr.mxu0 0.0
    %253 = vmatpush1.msra.mxu0 0.0
    %254 = vmatprep.subr.mxu0 0.0
    %255 = vmatpush1.msra.mxu0 0.0
    %256 = vmatprep.mubr.f32.mxu0 0.0
    %257 = vmatmul.mubr.f32.gmra.mrb[0].mxu0 %v145
    %v258 = vpop.f32.mrb[0].mxu0
    %v259 = vadd.f32 %v66, %v258
    %v260 = vpop.f32.mrb[0].mxu0
    %261 = vmatprep.mubr.f32.mxu0 0.0
    %262 = vmatmul.mubr.f32.gmra.mrb[0].mxu0 %v148
    %v263 = vpop.f32.mrb[0].mxu0
    %v264 = vadd.f32 %v71, %v263
    %v265 = vpop.f32.mrb[0].mxu0
    %266 = vmatprep.mubr.f32.mxu0 0.0
    %267 = vmatmul.mubr.f32.gmra.mrb[0].mxu0 %v151
    %v268 = vpop.f32.mrb[0].mxu0
    %v269 = vadd.f32 %v76, %v268
    %v270 = vpop.f32.mrb[0].mxu0
    %271 = vmatprep.mubr.f32.mxu0 0.0
    %272 = vmatmul.mubr.f32.gmra.mrb[0].mxu0 %v154
    %v273 = vpop.f32.mrb[0].mxu0
    %v274 = vadd.f32 %v81, %v273
    %v275 = vpop.f32.mrb[0].mxu0
    %276 = vmatprep.mubr.f32.mxu0 0.0
    %277 = vmatmul.mubr.f32.gmra.mrb[0].mxu0 %v157
    %v278 = vpop.f32.mrb[0].mxu0
    %v279 = vadd.f32 %v86, %v278
    %v280 = vpop.f32.mrb[0].mxu0
    %281 = vmatprep.mubr.f32.mxu0 0.0
    %282 = vmatmul.mubr.f32.gmra.mrb[0].mxu0 %v160
    %v283 = vpop.f32.mrb[0].mxu0
    %v284 = vadd.f32 %v91, %v283
    %v285 = vpop.f32.mrb[0].mxu0
    %286 = vmatprep.mubr.f32.mxu0 0.0
    %287 = vmatmul.mubr.f32.gmra.mrb[0].mxu0 %v163
    %v288 = vpop.f32.mrb[0].mxu0
    %v289 = vadd.f32 %v96, %v288
    %v290 = vpop.f32.mrb[0].mxu0
    %291 = vmatprep.mubr.f32.mxu0 0.0
    %292 = vmatmul.mubr.f32.gmra.mrb[0].mxu0 %v166
    %v293 = vpop.f32.mrb[0].mxu0
    %v294 = vadd.f32 %v101, %v293
    %v295 = vpop.f32.mrb[0].mxu0
    %296 = vmatprep.mubr.f32.mxu0 0.0
    %297 = vmatmul.mubr.f32.gmra.mrb[0].mxu0 %v169
    %v298 = vpop.f32.mrb[0].mxu0
    %v299 = vadd.f32 %v106, %v298
    %v300 = vpop.f32.mrb[0].mxu0
    %301 = vmatprep.mubr.f32.mxu0 0.0
    %302 = vmatmul.mubr.f32.gmra.mrb[0].mxu0 %v172
    %v303 = vpop.f32.mrb[0].mxu0
    %v304 = vadd.f32 %v111, %v303
    %v305 = vpop.f32.mrb[0].mxu0
    %306 = vmatprep.mubr.f32.mxu0 0.0
    %307 = vmatmul.mubr.f32.gmra.mrb[0].mxu0 %v175
    %v308 = vpop.f32.mrb[0].mxu0
    %v309 = vadd.f32 %v116, %v308
    %v310 = vpop.f32.mrb[0].mxu0
    %311 = vmatprep.mubr.f32.mxu0 0.0
    %312 = vmatmul.mubr.f32.gmra.mrb[0].mxu0 %v178
    %v313 = vpop.f32.mrb[0].mxu0
    %v314 = vadd.f32 %v121, %v313
    %v315 = vpop.f32.mrb[0].mxu0
    %316 = vmatprep.mubr.f32.mxu0 0.0
    %317 = vmatmul.mubr.f32.gmra.mrb[0].mxu0 %v181
    %v318 = vpop.f32.mrb[0].mxu0
    %v319 = vadd.f32 %v126, %v318
    %v320 = vpop.f32.mrb[0].mxu0
    %321 = vmatprep.mubr.f32.mxu0 0.0
    %322 = vmatmul.mubr.f32.gmra.mrb[0].mxu0 %v184
    %v323 = vpop.f32.mrb[0].mxu0
    %v324 = vadd.f32 %v131, %v323
    %v325 = vpop.f32.mrb[0].mxu0
    %326 = vmatprep.mubr.f32.mxu0 0.0
    %327 = vmatmul.mubr.f32.gmra.mrb[0].mxu0 %v187
    %v328 = vpop.f32.mrb[0].mxu0
    %v329 = vadd.f32 %v136, %v328
    %v330 = vpop.f32.mrb[0].mxu0
    %331 = vmatprep.mubr.f32.mxu0 0.0
    %332 = vmatmul.mubr.f32.gmra.mrb[0].mxu0 %v190
    %v333 = vpop.f32.mrb[0].mxu0
    %v334 = vadd.f32 %v141, %v333
    %v335 = vpop.f32.mrb[0].mxu0
    %336 = vdwg.mxu0
    %v337 = vmax.f32 %v259, 0.0
    %v338 = vmax.f32 %v264, 0.0
    %v339 = vmax.f32 %v269, 0.0
    %v340 = vmax.f32 %v274, 0.0
    %v341 = vmax.f32 %v279, 0.0
    %v342 = vmax.f32 %v284, 0.0
    %v343 = vmax.f32 %v289, 0.0
    %v344 = vmax.f32 %v294, 0.0
    %v345 = vmax.f32 %v299, 0.0
    %v346 = vmax.f32 %v304, 0.0
    %v347 = vmax.f32 %v309, 0.0
    %v348 = vmax.f32 %v314, 0.0
    %v349 = vmax.f32 %v319, 0.0
    %v350 = vmax.f32 %v324, 0.0
    %v351 = vmax.f32 %v329, 0.0
    %v352 = vmax.f32 %v334, 0.0
    %v353 = vld [vmem:[%s3] sm:$0xff]
    %v354 = vld [vmem:[%s4] sm:$0xff]
    %356 = vset.pattern.permute.xlu0 0
    %357 = vperm.xlu0 %356, %v354
    %v358 = vpop.permute.xlu0 %357
    %360 = vmatprep.subr.mxu0 0.0
    %361 = vmatpush1.msra.mxu0 %v337
    %362 = vmatprep.subr.mxu0 0.0
    %363 = vmatpush1.msra.mxu0 %v338
    %364 = vmatprep.subr.mxu0 0.0
    %365 = vmatpush1.msra.mxu0 %v339
    %366 = vmatprep.subr.mxu0 0.0
    %367 = vmatpush1.msra.mxu0 %v340
    %368 = vmatprep.subr.mxu0 0.0
    %369 = vmatpush1.msra.mxu0 %v341
    %370 = vmatprep.subr.mxu0 0.0
    %371 = vmatpush1.msra.mxu0 %v342
    %372 = vmatprep.subr.mxu0 0.0
    %373 = vmatpush1.msra.mxu0 %v343
    %374 = vmatprep.subr.mxu0 0.0
    %375 = vmatpush1.msra.mxu0 %v344
    %376 = vmatprep.subr.mxu0 0.0
    %377 = vmatpush1.msra.mxu0 %v345
    %378 = vmatprep.subr.mxu0 0.0
    %379 = vmatpush1.msra.mxu0 %v346
    %380 = vmatprep.subr.mxu0 0.0
    %381 = vmatpush1.msra.mxu0 %v347
    %382 = vmatprep.subr.mxu0 0.0
    %383 = vmatpush1.msra.mxu0 %v348
    %384 = vmatprep.subr.mxu0 0.0
    %385 = vmatpush1.msra.mxu0 %v349
    %386 = vmatprep.subr.mxu0 0.0
    %387 = vmatpush1.msra.mxu0 %v350
    %388 = vmatprep.subr.mxu0 0.0
    %389 = vmatpush1.msra.mxu0 %v351
    %390 = vmatprep.subr.mxu0 0.0
    %391 = vmatpush1.msra.mxu0 %v352
    %392 = vmatprep.subr.mxu0 0.0
    %393 = vmatpush1.msra.mxu0 0.0
    %394 = vmatprep.subr.mxu0 0.0
    %395 = vmatpush1.msra.mxu0 0.0
    %396 = vmatprep.subr.mxu0 0.0
    %397 = vmatpush1.msra.mxu0 0.0
    %398 = vmatprep.subr.mxu0 0.0
    %399 = vmatpush1.msra.mxu0 0.0
    %400 = vmatprep.subr.mxu0 0.0
    %401 = vmatpush1.msra.mxu0 0.0
    %402 = vmatprep.subr.mxu0 0.0
    %403 = vmatpush1.msra.mxu0 0.0
    %404 = vmatprep.subr.mxu0 0.0
    %405 = vmatpush1.msra.mxu0 0.0
    %406 = vmatprep.subr.mxu0 0.0
    %407 = vmatpush1.msra.mxu0 0.0
    %408 = vmatprep.subr.mxu0 0.0
    %409 = vmatpush1.msra.mxu0 0.0
    %410 = vmatprep.subr.mxu0 0.0
    %411 = vmatpush1.msra.mxu0 0.0
    %412 = vmatprep.subr.mxu0 0.0
    %413 = vmatpush1.msra.mxu0 0.0
    %414 = vmatprep.subr.mxu0 0.0
    %415 = vmatpush1.msra.mxu0 0.0
    %416 = vmatprep.subr.mxu0 0.0
    %417 = vmatpush1.msra.mxu0 0.0
    %418 = vmatprep.subr.mxu0 0.0
    %419 = vmatpush1.msra.mxu0 0.0
    %420 = vmatprep.subr.mxu0 0.0
    %421 = vmatpush1.msra.mxu0 0.0
    %422 = vmatprep.subr.mxu0 0.0
    %423 = vmatpush1.msra.mxu0 0.0
    %424 = vmatprep.mubr.f32.mxu0 0.0
    %425 = vmatmul.mubr.f32.gmra.mrb[0].mxu0 %v353
    %v426 = vpop.f32.mrb[0].mxu0
    %v427 = vadd.f32 %v358, %v426
    %v428 = vpop.f32.mrb[0].mxu0
    %429 = vdwg.mxu0
    %430 = vst.msk [vmem:[#allocation3] sm:$0xff] %vm21, %v427
    // Predicated region
    $region22: #{tpu_custom_call.1} parent=1 // pred_check
      _
    $region23: #{tpu_custom_call.1} parent=1 // pred_check_branch
      %432 = sbr.rel (0) target = $region25
    $region24: #{tpu_custom_call.1} parent=1 // pred_region
      %s434 = ssub.s32 128, 128
      %435 = vsyncadd [#allocation4], %s434
      %s437 = sshll.u32 [#allocation3], 4
      %s438 = int_to_ptr.vmem [resolvable:$true] %s437
      %440 = dma.vmem_to_hbm [thread:$0]  %s438, 128, %s5, [#allocation4]
    $region25: #{tpu_custom_call.1} parent=1 // pred_fallthru
      _
    // Predicated region
    $region26: #{tpu_custom_call.1} parent=1 // pred_check
      _
    $region27: #{tpu_custom_call.1} parent=1 // pred_check_branch
      %442 = sbr.rel (0) target = $region29
    $region28: #{tpu_custom_call.1} parent=1 // pred_region
      %443 = dma.done [#allocation4], 128
    $region29: #{tpu_custom_call.1} parent=1 // pred_fallthru
      _
    %444 = vsyncpa [#allocation4], 1

</llo_original>
